<compile_context>
chip_gen: v5e
topology: v5e:2x2
jax: 0.10.0
libtpu: 0.0.40
codegen_flags: <defaults>
</compile_context>

<pallas_src>
import jax
import jax.numpy as jnp
from jax.experimental import pallas as pl
from jax.experimental.pallas import tpu as pltpu


def time_embedding_kernel(t_ref,           # (B,) int32, SMEM (scalar prefetch)
                          table_ref,       # (T, dim)     f32   VMEM (resident)
                          w1_ref,          # (dim, 4*dim) bf16  VMEM (resident)
                          b1_ref,          # (1, 4*dim)   f32   VMEM
                          w2_ref,          # (4*dim, dim) bf16  VMEM (resident)
                          b2_ref,          # (1, dim)     f32   VMEM
                          o_ref,           # (B, dim)     f32   VMEM
                          x_vmem):         # (B, dim)     f32   scratch
    B = o_ref.shape[0]

    # ---- Embedding gather: B in-VMEM dynamic-slice row reads (no HBM DMA tail) ----
    for i in range(B):                      # B is small & static -> unrolled
        x_vmem[pl.ds(i, 1), :] = table_ref[pl.ds(t_ref[i], 1), :]

    # ---- MLP: Linear(dim, 4*dim) -> SiLU -> Linear(4*dim, dim), batched over B ----
    # bf16 operands on the MXU, f32 accumulation; SiLU/bias in f32.
    x = x_vmem[...].astype(jnp.bfloat16)                              # (B, dim)
    h = jnp.dot(x, w1_ref[...],
                preferred_element_type=jnp.float32) + b1_ref[...]     # (B, 4*dim) f32
    h = h * jax.nn.sigmoid(h)                                         # SiLU (f32)
    y = jnp.dot(h.astype(jnp.bfloat16), w2_ref[...],
                preferred_element_type=jnp.float32) + b2_ref[...]     # (B, dim) f32
    o_ref[...] = y.astype(o_ref.dtype)


def time_embedding(t, table, w1, b1, w2, b2):
    """t: (B,) int -> (B, dim) float32.

    table: (T, dim) f32; w1: (dim, 4*dim); b1: (4*dim,); w2: (4*dim, dim); b2: (dim,).
    Weights are cast to bf16 for streaming; biases / table / output stay f32.
    """
    B = t.shape[0]
    T, dim = table.shape
    hidden = w1.shape[1]

    t = jnp.clip(t.astype(jnp.int32), 0, T - 1)      # guard dynamic row index
    w1_bf = w1.astype(jnp.bfloat16)
    w2_bf = w2.astype(jnp.bfloat16)
    b1_2d = b1.reshape(1, hidden).astype(jnp.float32)
    b2_2d = b2.reshape(1, dim).astype(jnp.float32)
    table = table.astype(jnp.float32)

    grid_spec = pltpu.PrefetchScalarGridSpec(
        num_scalar_prefetch=1,          # t -> SMEM, visible to index_maps & kernel
        grid=(1,),                      # single launch: whole batch in one step
        in_specs=[
            pl.BlockSpec((T, dim),      lambda i, t_ref: (0, 0)),  # table (VMEM resident)
            pl.BlockSpec((dim, hidden), lambda i, t_ref: (0, 0)),  # w1 bf16 (resident)
            pl.BlockSpec((1, hidden),   lambda i, t_ref: (0, 0)),  # b1
            pl.BlockSpec((hidden, dim), lambda i, t_ref: (0, 0)),  # w2 bf16 (resident)
            pl.BlockSpec((1, dim),      lambda i, t_ref: (0, 0)),  # b2
        ],
        out_specs=pl.BlockSpec((B, dim), lambda i, t_ref: (0, 0)),
        scratch_shapes=[
            pltpu.VMEM((B, dim), jnp.float32),       # gathered embedding rows
        ],
    )

    cost = pl.CostEstimate(
        flops=2 * B * dim * hidden * 2,              # two GEMMs
        transcendentals=B * hidden,                  # sigmoid in SiLU
        bytes_accessed=(w1_bf.size + w2_bf.size) * 2
                       + (b1_2d.size + b2_2d.size) * 4
                       + table.size * 4
                       + B * dim * 4,
    )

    return pl.pallas_call(
        time_embedding_kernel,
        out_shape=jax.ShapeDtypeStruct((B, dim), jnp.float32),
        grid_spec=grid_spec,
        compiler_params=pltpu.CompilerParams(
            dimension_semantics=("arbitrary",)),
        cost_estimate=cost,
    )(t, table, w1_bf, b1_2d, w2_bf, b2_2d)


def reference(t, table, w1_bf, b1, w2_bf, b2):
    """Same math as the kernel (bf16 operands, f32 accumulation)."""
    x = table[t].astype(jnp.bfloat16)                 # embedding lookup
    h = jnp.dot(x, w1_bf, preferred_element_type=jnp.float32) + b1
    h = h * jax.nn.sigmoid(h)
    return jnp.dot(h.astype(jnp.bfloat16), w2_bf,
                   preferred_element_type=jnp.float32) + b2


if __name__ == "__main__":
    # ExpertNetE1 defaults: base_channels=256, timesteps=100.  Small-but-representative
    # test shapes: dim is a multiple of 128 (lane-dense output), timesteps matches the
    # module default.
    B = 8
    dim = 128
    hidden = 4 * dim
    timesteps = 100

    key = jax.random.PRNGKey(0)
    k_t, k_tab, k_w1, k_b1, k_w2, k_b2 = jax.random.split(key, 6)

    t = jax.random.randint(k_t, (B,), 0, timesteps, dtype=jnp.int32)
    table = jax.random.normal(k_tab, (timesteps, dim), dtype=jnp.float32)
    # Linear weights stored as (in, out) = transpose of PyTorch's (out, in).
    w1 = jax.random.normal(k_w1, (dim, hidden), dtype=jnp.float32) * 0.05
    b1 = jax.random.normal(k_b1, (hidden,), dtype=jnp.float32) * 0.05
    w2 = jax.random.normal(k_w2, (hidden, dim), dtype=jnp.float32) * 0.05
    b2 = jax.random.normal(k_b2, (dim,), dtype=jnp.float32) * 0.05

    out = time_embedding(t, table, w1, b1, w2, b2)
    out = jax.block_until_ready(out)

    ref = reference(t, table,
                    w1.astype(jnp.bfloat16), b1.reshape(1, hidden),
                    w2.astype(jnp.bfloat16), b2.reshape(1, dim))
    assert out.shape == (B, dim), out.shape
    err = float(jnp.max(jnp.abs(out - ref)))
    assert jnp.allclose(out, ref, atol=2e-3, rtol=2e-3), (
        f"mismatch vs reference, max err {err}")

    print("KERNEL_OK")
</pallas_src>

<mosaic_0001>
module attributes {stable_mosaic.version = 11 : i64} {
  func.func @time_embedding_kernel(%arg0: i32, %arg1: memref<8xi32, #tpu.memory_space<smem>>, %arg2: memref<100x128xf32, #tpu.memory_space<vmem>>, %arg3: memref<128x512xbf16, #tpu.memory_space<vmem>>, %arg4: memref<1x512xf32, #tpu.memory_space<vmem>>, %arg5: memref<512x128xbf16, #tpu.memory_space<vmem>>, %arg6: memref<1x128xf32, #tpu.memory_space<vmem>>, %arg7: memref<8x128xf32, #tpu.memory_space<vmem>>, %arg8: memref<8x128xf32, #tpu.memory_space<vmem>>) attributes {dimension_semantics = [#tpu.dimension_semantics<arbitrary>], iteration_bounds = array<i64: 1>, scalar_prefetch = 1 : i64, scratch_operands = 1 : i64, tpu.core_type = #tpu.core_type<tc>, window_params = [{pipeline_mode = #tpu.pipeline_mode<synchronous>, transform_indices = @transform_0, window_bounds = array<i64: 100, 128>}, {pipeline_mode = #tpu.pipeline_mode<synchronous>, transform_indices = @transform_1, window_bounds = array<i64: 128, 512>}, {pipeline_mode = #tpu.pipeline_mode<synchronous>, transform_indices = @transform_2, window_bounds = array<i64: 1, 512>}, {pipeline_mode = #tpu.pipeline_mode<synchronous>, transform_indices = @transform_3, window_bounds = array<i64: 512, 128>}, {pipeline_mode = #tpu.pipeline_mode<synchronous>, transform_indices = @transform_4, window_bounds = array<i64: 1, 128>}, {pipeline_mode = #tpu.pipeline_mode<synchronous>, transform_indices = @transform_5, window_bounds = array<i64: 8, 128>}]} {
    %c0 = arith.constant 0 : index
    %0 = memref.load %arg1[%c0] : memref<8xi32, #tpu.memory_space<smem>>
    %1 = arith.index_cast %0 : i32 to index
    %c0_0 = arith.constant 0 : index
    %2 = vector.load %arg2[%1, %c0_0] : memref<100x128xf32, #tpu.memory_space<vmem>>, vector<1x128xf32>
    %c0_1 = arith.constant 0 : index
    %c0_2 = arith.constant 0 : index
    %3 = vector.load %arg8[%c0_1, %c0_2] : memref<8x128xf32, #tpu.memory_space<vmem>>, vector<1x128xf32>
    tpu.vector_store %arg8[%c0_1, %c0_2], %2 {strides = array<i32>} : memref<8x128xf32, #tpu.memory_space<vmem>>, vector<1x128xf32>,
    %c1 = arith.constant 1 : index
    %4 = memref.load %arg1[%c1] : memref<8xi32, #tpu.memory_space<smem>>
    %5 = arith.index_cast %4 : i32 to index
    %c0_3 = arith.constant 0 : index
    %6 = vector.load %arg2[%5, %c0_3] : memref<100x128xf32, #tpu.memory_space<vmem>>, vector<1x128xf32>
    %c1_4 = arith.constant 1 : index
    %c0_5 = arith.constant 0 : index
    %7 = vector.load %arg8[%c1_4, %c0_5] : memref<8x128xf32, #tpu.memory_space<vmem>>, vector<1x128xf32>
    tpu.vector_store %arg8[%c1_4, %c0_5], %6 {strides = array<i32>} : memref<8x128xf32, #tpu.memory_space<vmem>>, vector<1x128xf32>,
    %c2 = arith.constant 2 : index
    %8 = memref.load %arg1[%c2] : memref<8xi32, #tpu.memory_space<smem>>
    %9 = arith.index_cast %8 : i32 to index
    %c0_6 = arith.constant 0 : index
    %10 = vector.load %arg2[%9, %c0_6] : memref<100x128xf32, #tpu.memory_space<vmem>>, vector<1x128xf32>
    %c2_7 = arith.constant 2 : index
    %c0_8 = arith.constant 0 : index
    %11 = vector.load %arg8[%c2_7, %c0_8] : memref<8x128xf32, #tpu.memory_space<vmem>>, vector<1x128xf32>
    tpu.vector_store %arg8[%c2_7, %c0_8], %10 {strides = array<i32>} : memref<8x128xf32, #tpu.memory_space<vmem>>, vector<1x128xf32>,
    %c3 = arith.constant 3 : index
    %12 = memref.load %arg1[%c3] : memref<8xi32, #tpu.memory_space<smem>>
    %13 = arith.index_cast %12 : i32 to index
    %c0_9 = arith.constant 0 : index
    %14 = vector.load %arg2[%13, %c0_9] : memref<100x128xf32, #tpu.memory_space<vmem>>, vector<1x128xf32>
    %c3_10 = arith.constant 3 : index
    %c0_11 = arith.constant 0 : index
    %15 = vector.load %arg8[%c3_10, %c0_11] : memref<8x128xf32, #tpu.memory_space<vmem>>, vector<1x128xf32>
    tpu.vector_store %arg8[%c3_10, %c0_11], %14 {strides = array<i32>} : memref<8x128xf32, #tpu.memory_space<vmem>>, vector<1x128xf32>,
    %c4 = arith.constant 4 : index
    %16 = memref.load %arg1[%c4] : memref<8xi32, #tpu.memory_space<smem>>
    %17 = arith.index_cast %16 : i32 to index
    %c0_12 = arith.constant 0 : index
    %18 = vector.load %arg2[%17, %c0_12] : memref<100x128xf32, #tpu.memory_space<vmem>>, vector<1x128xf32>
    %c4_13 = arith.constant 4 : index
    %c0_14 = arith.constant 0 : index
    %19 = vector.load %arg8[%c4_13, %c0_14] : memref<8x128xf32, #tpu.memory_space<vmem>>, vector<1x128xf32>
    tpu.vector_store %arg8[%c4_13, %c0_14], %18 {strides = array<i32>} : memref<8x128xf32, #tpu.memory_space<vmem>>, vector<1x128xf32>,
    %c5 = arith.constant 5 : index
    %20 = memref.load %arg1[%c5] : memref<8xi32, #tpu.memory_space<smem>>
    %21 = arith.index_cast %20 : i32 to index
    %c0_15 = arith.constant 0 : index
    %22 = vector.load %arg2[%21, %c0_15] : memref<100x128xf32, #tpu.memory_space<vmem>>, vector<1x128xf32>
    %c5_16 = arith.constant 5 : index
    %c0_17 = arith.constant 0 : index
    %23 = vector.load %arg8[%c5_16, %c0_17] : memref<8x128xf32, #tpu.memory_space<vmem>>, vector<1x128xf32>
    tpu.vector_store %arg8[%c5_16, %c0_17], %22 {strides = array<i32>} : memref<8x128xf32, #tpu.memory_space<vmem>>, vector<1x128xf32>,
    %c6 = arith.constant 6 : index
    %24 = memref.load %arg1[%c6] : memref<8xi32, #tpu.memory_space<smem>>
    %25 = arith.index_cast %24 : i32 to index
    %c0_18 = arith.constant 0 : index
    %26 = vector.load %arg2[%25, %c0_18] : memref<100x128xf32, #tpu.memory_space<vmem>>, vector<1x128xf32>
    %c6_19 = arith.constant 6 : index
    %c0_20 = arith.constant 0 : index
    %27 = vector.load %arg8[%c6_19, %c0_20] : memref<8x128xf32, #tpu.memory_space<vmem>>, vector<1x128xf32>
    tpu.vector_store %arg8[%c6_19, %c0_20], %26 {strides = array<i32>} : memref<8x128xf32, #tpu.memory_space<vmem>>, vector<1x128xf32>,
    %c7 = arith.constant 7 : index
    %28 = memref.load %arg1[%c7] : memref<8xi32, #tpu.memory_space<smem>>
    %29 = arith.index_cast %28 : i32 to index
    %c0_21 = arith.constant 0 : index
    %30 = vector.load %arg2[%29, %c0_21] : memref<100x128xf32, #tpu.memory_space<vmem>>, vector<1x128xf32>
    %c7_22 = arith.constant 7 : index
    %c0_23 = arith.constant 0 : index
    %31 = vector.load %arg8[%c7_22, %c0_23] : memref<8x128xf32, #tpu.memory_space<vmem>>, vector<1x128xf32>
    tpu.vector_store %arg8[%c7_22, %c0_23], %30 {strides = array<i32>} : memref<8x128xf32, #tpu.memory_space<vmem>>, vector<1x128xf32>,
    %c0_24 = arith.constant 0 : index
    %c0_25 = arith.constant 0 : index
    %32 = vector.load %arg8[%c0_24, %c0_25] : memref<8x128xf32, #tpu.memory_space<vmem>>, vector<8x128xf32>
    %33 = arith.truncf %32 : vector<8x128xf32> to vector<8x128xbf16>
    %c0_26 = arith.constant 0 : index
    %c0_27 = arith.constant 0 : index
    %34 = vector.load %arg3[%c0_26, %c0_27] : memref<128x512xbf16, #tpu.memory_space<vmem>>, vector<128x512xbf16>
    %cst = arith.constant dense<0.000000e+00> : vector<8x512xf32>
    %35 = tpu.matmul %33, %34, %cst {dimension_numbers = #tpu.dot_dimension_numbers<[1], [0], [0], [1], [0, 0, 1, 1], [], []>} : vector<8x128xbf16>, vector<128x512xbf16>, vector<8x512xf32> -> vector<8x512xf32>
    %c0_28 = arith.constant 0 : index
    %c0_29 = arith.constant 0 : index
    %36 = vector.load %arg4[%c0_28, %c0_29] : memref<1x512xf32, #tpu.memory_space<vmem>>, vector<1x512xf32>
    %37 = vector.broadcast %36 : vector<1x512xf32> to vector<8x512xf32>
    %38 = arith.addf %35, %37 : vector<8x512xf32>
    %39 = arith.negf %38 : vector<8x512xf32>
    %40 = math.exp %39 : vector<8x512xf32>
    %cst_30 = arith.constant 1.000000e+00 : f32
    %41 = vector.broadcast %cst_30 : f32 to vector<8x512xf32>
    %42 = arith.addf %41, %40 : vector<8x512xf32>
    %43 = arith.divf %41, %42 : vector<8x512xf32>
    %44 = arith.mulf %38, %43 : vector<8x512xf32>
    %45 = arith.truncf %44 : vector<8x512xf32> to vector<8x512xbf16>
    %c0_31 = arith.constant 0 : index
    %c0_32 = arith.constant 0 : index
    %46 = vector.load %arg5[%c0_31, %c0_32] : memref<512x128xbf16, #tpu.memory_space<vmem>>, vector<512x128xbf16>
    %cst_33 = arith.constant dense<0.000000e+00> : vector<8x128xf32>
    %47 = tpu.matmul %45, %46, %cst_33 {dimension_numbers = #tpu.dot_dimension_numbers<[1], [0], [0], [1], [0, 0, 1, 1], [], []>} : vector<8x512xbf16>, vector<512x128xbf16>, vector<8x128xf32> -> vector<8x128xf32>
    %c0_34 = arith.constant 0 : index
    %c0_35 = arith.constant 0 : index
    %48 = vector.load %arg6[%c0_34, %c0_35] : memref<1x128xf32, #tpu.memory_space<vmem>>, vector<1x128xf32>
    %49 = vector.broadcast %48 : vector<1x128xf32> to vector<8x128xf32>
    %50 = arith.addf %47, %49 : vector<8x128xf32>
    %c0_36 = arith.constant 0 : index
    %c0_37 = arith.constant 0 : index
    %51 = vector.load %arg7[%c0_36, %c0_37] : memref<8x128xf32, #tpu.memory_space<vmem>>, vector<8x128xf32>
    tpu.vector_store %arg7[%c0_36, %c0_37], %50 {strides = array<i32>} : memref<8x128xf32, #tpu.memory_space<vmem>>, vector<8x128xf32>,
    return
  }
  func.func @transform_0(%arg0: i32, %arg1: memref<8xi32, #tpu.memory_space<smem>>) -> (i32, i32) {
    %c0_i32 = arith.constant 0 : i32
    %c0_i32_0 = arith.constant 0 : i32
    %c0_i32_1 = arith.constant 0 : i32
    return %c0_i32, %c0_i32_0 : i32, i32
  }
  func.func @transform_1(%arg0: i32, %arg1: memref<8xi32, #tpu.memory_space<smem>>) -> (i32, i32) {
    %c0_i32 = arith.constant 0 : i32
    %c0_i32_0 = arith.constant 0 : i32
    %c0_i32_1 = arith.constant 0 : i32
    return %c0_i32, %c0_i32_0 : i32, i32
  }
  func.func @transform_2(%arg0: i32, %arg1: memref<8xi32, #tpu.memory_space<smem>>) -> (i32, i32) {
    %c0_i32 = arith.constant 0 : i32
    %c0_i32_0 = arith.constant 0 : i32
    %c0_i32_1 = arith.constant 0 : i32
    return %c0_i32, %c0_i32_0 : i32, i32
  }
  func.func @transform_3(%arg0: i32, %arg1: memref<8xi32, #tpu.memory_space<smem>>) -> (i32, i32) {
    %c0_i32 = arith.constant 0 : i32
    %c0_i32_0 = arith.constant 0 : i32
    %c0_i32_1 = arith.constant 0 : i32
    return %c0_i32, %c0_i32_0 : i32, i32
  }
  func.func @transform_4(%arg0: i32, %arg1: memref<8xi32, #tpu.memory_space<smem>>) -> (i32, i32) {
    %c0_i32 = arith.constant 0 : i32
    %c0_i32_0 = arith.constant 0 : i32
    %c0_i32_1 = arith.constant 0 : i32
    return %c0_i32, %c0_i32_0 : i32, i32
  }
  func.func @transform_5(%arg0: i32, %arg1: memref<8xi32, #tpu.memory_space<smem>>) -> (i32, i32) {
    %c0_i32 = arith.constant 0 : i32
    %c0_i32_0 = arith.constant 0 : i32
    %c0_i32_1 = arith.constant 0 : i32
    return %c0_i32, %c0_i32_0 : i32, i32
  }
}

</mosaic_0001>

<llo_original>
// kernel: tpu_custom_call.1
$region0: #{tpu_custom_call.1}
  #allocation0 [shape = 'u32[]', space=smem, size = 0x4, offset = 0x4, fixed_abs, tag = 'smem constant byte address 0x4 - core index']
  #allocation1 [shape = 'u32[72,128]{1,0:T(1,128)}', space=vmem, size = 0x9000, scoped, tag = 'internal scratch']
  #allocation2 [shape = 'f32[8,128]{1,0:T(8,128)}', space=vmem, size = 0x1000, scoped, tag = 'scratch operand']
  #allocation3 [shape = 's32[1]{0}', space=sflag, size = 0x4, scoped, tag = 'scoped memory for tpu_custom_call.1']
  #allocation4 [shape = 'u8[512]{0}', space=smem, size = 0x200, scoped, tag = 'prefetched SMEM operand 0']
  %s0 = inlined_call_operand.hbm [shape: s32[8], index: 0, kind: input, shape index: {}]
  %s1 = inlined_call_operand.hbm [shape: f32[100,128], index: 1, kind: input, shape index: {}]
  %s2 = inlined_call_operand.hbm [shape: bf16[128,512], index: 2, kind: input, shape index: {}]
  %s3 = inlined_call_operand.hbm [shape: f32[1,512], index: 3, kind: input, shape index: {}]
  %s4 = inlined_call_operand.hbm [shape: bf16[512,128], index: 4, kind: input, shape index: {}]
  %s5 = inlined_call_operand.vmem [shape: f32[1,128], index: 5, kind: input, shape index: {}]
  %s6 = inlined_call_operand.hbm [shape: f32[8,128], index: 6, kind: output, shape index: {}]
  %s7 = sld [smem:[#allocation0]]
  $region46: #{tpu_custom_call.1} parent=0
    _
  %s9 = ssub.s32 1, %s7
  %s10 = scalar_select 0, %s9, %s7
  %s12 = sshll.u32 %s0, 4
  %s13 = int_to_ptr.hbm [resolvable:$true] %s12
  %15 = dma.hbm_to_smem %s13, 16, [#allocation4], [#allocation3]
  %17 = dma.done [#allocation3], 16
  %18 = sfence
  $region1: #{tpu_custom_call.1} parent=0
    #allocation5 [shape = 'u8[53248]{0}', space=vmem, size = 0xd000, scoped, tag = 'input window, operand 1, single buffered']
    #allocation6 [shape = 's32[1]{0}', space=sflag, size = 0x4, scoped, tag = 'scoped memory for tpu_custom_call.1']
    #allocation7 [shape = 's32[1]{0}', space=sflag, size = 0x4, scoped, tag = 'scoped memory for tpu_custom_call.1']
    #allocation8 [shape = 'u8[131072]{0}', space=vmem, size = 0x20000, scoped, tag = 'input window, operand 2, single buffered']
    #allocation9 [shape = 's32[1]{0}', space=sflag, size = 0x4, scoped, tag = 'scoped memory for tpu_custom_call.1']
    #allocation10 [shape = 'u8[2048]{0}', space=vmem, size = 0x800, scoped, tag = 'input window, operand 3, single buffered']
    #allocation11 [shape = 'u8[131072]{0}', space=vmem, size = 0x20000, scoped, tag = 'input window, operand 4, single buffered']
    #allocation12 [shape = 's32[1]{0}', space=sflag, size = 0x4, scoped, tag = 'scoped memory for tpu_custom_call.1']
    #allocation13 [shape = 'u8[4096]{0}', space=vmem, size = 0x1000, scoped, tag = 'output window, operand 0, single buffered']
    %19 = vsyncpa [#allocation6], 0
    %20 = vsyncpa [#allocation9], 0
    %21 = vsyncpa [#allocation12], 0
    %22 = vsyncpa [#allocation7], 0
    // Predicated region
    $region2: #{tpu_custom_call.1} parent=1 // pred_check
      _
    $region3: #{tpu_custom_call.1} parent=1 // pred_check_branch
      %24 = sbr.rel (0) target = $region5
    $region4: #{tpu_custom_call.1} parent=1 // pred_region
      %26 = vsyncadd [#allocation6], 0
      %s27 = sshll.u32 %s1, 4
      %s28 = int_to_ptr.hbm [resolvable:$true] %s27
      %s29 = sshll.u32 [#allocation5], 4
      %s30 = int_to_ptr.vmem [resolvable:$true] %s29
      %35 = dma.hbm_to_vmem [thread:$0]  %s28, 1664, %s30, [#allocation6], 128, 128, 8
    $region5: #{tpu_custom_call.1} parent=1 // pred_fallthru
      _
    // Predicated region
    $region6: #{tpu_custom_call.1} parent=1 // pred_check
      _
    $region7: #{tpu_custom_call.1} parent=1 // pred_check_branch
      %37 = sbr.rel (0) target = $region9
    $region8: #{tpu_custom_call.1} parent=1 // pred_region
      %39 = vsyncadd [#allocation9], 0
      %s40 = sshll.u32 %s2, 4
      %s41 = int_to_ptr.hbm [resolvable:$true] %s40
      %s42 = sshll.u32 [#allocation8], 4
      %s43 = int_to_ptr.vmem [resolvable:$true] %s42
      %48 = dma.hbm_to_vmem [thread:$0]  %s41, 4096, %s43, [#allocation9], 256, 256, 16
    $region9: #{tpu_custom_call.1} parent=1 // pred_fallthru
      _
    // Predicated region
    $region10: #{tpu_custom_call.1} parent=1 // pred_check
      _
    $region11: #{tpu_custom_call.1} parent=1 // pred_check_branch
      %50 = sbr.rel (0) target = $region13
    $region12: #{tpu_custom_call.1} parent=1 // pred_region
      %52 = vsyncadd [#allocation9], 0
      %s54 = sshll.u32 %s3, 4
      %s55 = int_to_ptr.hbm [resolvable:$true] %s54
      %s56 = sshll.u32 [#allocation10], 4
      %s57 = int_to_ptr.vmem [resolvable:$true] %s56
      %59 = dma.hbm_to_vmem [thread:$0]  %s55, 64, %s57, [#allocation9]
    $region13: #{tpu_custom_call.1} parent=1 // pred_fallthru
      _
    // Predicated region
    $region14: #{tpu_custom_call.1} parent=1 // pred_check
      _
    $region15: #{tpu_custom_call.1} parent=1 // pred_check_branch
      %61 = sbr.rel (0) target = $region17
    $region16: #{tpu_custom_call.1} parent=1 // pred_region
      %63 = vsyncadd [#allocation12], 0
      %s64 = sshll.u32 %s4, 4
      %s65 = int_to_ptr.hbm [resolvable:$true] %s64
      %s66 = sshll.u32 [#allocation11], 4
      %s67 = int_to_ptr.vmem [resolvable:$true] %s66
      %72 = dma.hbm_to_vmem [thread:$0]  %s65, 4096, %s67, [#allocation12], 64, 64, 4
    $region17: #{tpu_custom_call.1} parent=1 // pred_fallthru
      _
    // Predicated region
    $region18: #{tpu_custom_call.1} parent=1 // pred_check
      _
    $region19: #{tpu_custom_call.1} parent=1 // pred_check_branch
      %74 = sbr.rel (0) target = $region21
    $region20: #{tpu_custom_call.1} parent=1 // pred_region
      _
    $region21: #{tpu_custom_call.1} parent=1 // pred_fallthru
      _
    // Predicated region
    $region22: #{tpu_custom_call.1} parent=1 // pred_check
      _
    $region23: #{tpu_custom_call.1} parent=1 // pred_check_branch
      %76 = sbr.rel (0) target = $region25
    $region24: #{tpu_custom_call.1} parent=1 // pred_region
      %78 = dma.done [#allocation6], 1664
    $region25: #{tpu_custom_call.1} parent=1 // pred_fallthru
      _
    // Predicated region
    $region26: #{tpu_custom_call.1} parent=1 // pred_check
      _
    $region27: #{tpu_custom_call.1} parent=1 // pred_check_branch
      %80 = sbr.rel (0) target = $region29
    $region28: #{tpu_custom_call.1} parent=1 // pred_region
      %82 = dma.done [#allocation9], 4096
    $region29: #{tpu_custom_call.1} parent=1 // pred_fallthru
      _
    // Predicated region
    $region30: #{tpu_custom_call.1} parent=1 // pred_check
      _
    $region31: #{tpu_custom_call.1} parent=1 // pred_check_branch
      %84 = sbr.rel (0) target = $region33
    $region32: #{tpu_custom_call.1} parent=1 // pred_region
      %86 = dma.done [#allocation9], 64
    $region33: #{tpu_custom_call.1} parent=1 // pred_fallthru
      _
    // Predicated region
    $region34: #{tpu_custom_call.1} parent=1 // pred_check
      _
    $region35: #{tpu_custom_call.1} parent=1 // pred_check_branch
      %88 = sbr.rel (0) target = $region37
    $region36: #{tpu_custom_call.1} parent=1 // pred_region
      %90 = dma.done [#allocation12], 4096
    $region37: #{tpu_custom_call.1} parent=1 // pred_fallthru
      _
    %s91 = sld [smem:[#allocation4]]
    %s92 = scalar_lea.vmem [#allocation5], %s91
    %v93 = vld [vmem:[%s92] sm:$0x1]
    %94 = vst [vmem:[#allocation2] sm:$0x1] %v93
    %s95 = sld [smem:[#allocation4 + $0x1]]
    %s96 = scalar_lea.vmem [#allocation5], %s95
    %v97 = vld [vmem:[%s96] sm:$0x1]
    %98 = vst [vmem:[#allocation2 + $0x1] sm:$0x1] %v97
    %s99 = sld [smem:[#allocation4 + $0x2]]
    %s100 = scalar_lea.vmem [#allocation5], %s99
    %v101 = vld [vmem:[%s100] sm:$0x1]
    %102 = vst [vmem:[#allocation2 + $0x2] sm:$0x1] %v101
    %s103 = sld [smem:[#allocation4 + $0x3]]
    %s104 = scalar_lea.vmem [#allocation5], %s103
    %v105 = vld [vmem:[%s104] sm:$0x1]
    %106 = vst [vmem:[#allocation2 + $0x3] sm:$0x1] %v105
    %s107 = sld [smem:[#allocation4 + $0x4]]
    %s108 = scalar_lea.vmem [#allocation5], %s107
    %v109 = vld [vmem:[%s108] sm:$0x1]
    %110 = vst [vmem:[#allocation2 + $0x4] sm:$0x1] %v109
    %s111 = sld [smem:[#allocation4 + $0x5]]
    %s112 = scalar_lea.vmem [#allocation5], %s111
    %v113 = vld [vmem:[%s112] sm:$0x1]
    %114 = vst [vmem:[#allocation2 + $0x5] sm:$0x1] %v113
    %s115 = sld [smem:[#allocation4 + $0x6]]
    %s116 = scalar_lea.vmem [#allocation5], %s115
    %v117 = vld [vmem:[%s116] sm:$0x1]
    %118 = vst [vmem:[#allocation2 + $0x6] sm:$0x1] %v117
    %s119 = sld [smem:[#allocation4 + $0x7]]
    %s120 = scalar_lea.vmem [#allocation5], %s119
    %v121 = vld [vmem:[%s120] sm:$0x1]
    %122 = vst [vmem:[#allocation2 + $0x7] sm:$0x1] %v121
    %v123 = vld [vmem:[#allocation2] sm:$0xff]
    %v124 = vpack.c.bf16 %v123, %v123
    %v125 = vld [vmem:[#allocation8] sm:$0xff]
    %v126 = vld [vmem:[#allocation8 + $0x8] sm:$0xff]
    %v127 = vld [vmem:[#allocation8 + $0x10] sm:$0xff]
    %v128 = vld [vmem:[#allocation8 + $0x18] sm:$0xff]
    %v129 = vld [vmem:[#allocation8 + $0x20] sm:$0xff]
    %v130 = vld [vmem:[#allocation8 + $0x28] sm:$0xff]
    %v131 = vld [vmem:[#allocation8 + $0x30] sm:$0xff]
    %v132 = vld [vmem:[#allocation8 + $0x38] sm:$0xff]
    %v133 = vld [vmem:[#allocation8 + $0x40] sm:$0xff]
    %v134 = vld [vmem:[#allocation8 + $0x48] sm:$0xff]
    %v135 = vld [vmem:[#allocation8 + $0x50] sm:$0xff]
    %v136 = vld [vmem:[#allocation8 + $0x58] sm:$0xff]
    %v137 = vld [vmem:[#allocation8 + $0x60] sm:$0xff]
    %v138 = vld [vmem:[#allocation8 + $0x68] sm:$0xff]
    %v139 = vld [vmem:[#allocation8 + $0x70] sm:$0xff]
    %v140 = vld [vmem:[#allocation8 + $0x78] sm:$0xff]
    %v141 = vld [vmem:[#allocation8 + $0x80] sm:$0xff]
    %v142 = vld [vmem:[#allocation8 + $0x88] sm:$0xff]
    %v143 = vld [vmem:[#allocation8 + $0x90] sm:$0xff]
    %v144 = vld [vmem:[#allocation8 + $0x98] sm:$0xff]
    %v145 = vld [vmem:[#allocation8 + $0xa0] sm:$0xff]
    %v146 = vld [vmem:[#allocation8 + $0xa8] sm:$0xff]
    %v147 = vld [vmem:[#allocation8 + $0xb0] sm:$0xff]
    %v148 = vld [vmem:[#allocation8 + $0xb8] sm:$0xff]
    %v149 = vld [vmem:[#allocation8 + $0xc0] sm:$0xff]
    %v150 = vld [vmem:[#allocation8 + $0xc8] sm:$0xff]
    %v151 = vld [vmem:[#allocation8 + $0xd0] sm:$0xff]
    %v152 = vld [vmem:[#allocation8 + $0xd8] sm:$0xff]
    %v153 = vld [vmem:[#allocation8 + $0xe0] sm:$0xff]
    %v154 = vld [vmem:[#allocation8 + $0xe8] sm:$0xff]
    %v155 = vld [vmem:[#allocation8 + $0xf0] sm:$0xff]
    %v156 = vld [vmem:[#allocation8 + $0xf8] sm:$0xff]
    %v157 = vld [vmem:[#allocation10] sm:$0xf]
    %v159 = vperm.slane %v157, 0
    %v160 = vperm.slane %v157, 1
    %v161 = vperm.slane %v157, 2
    %v162 = vperm.slane %v157, 3
    %v199 = vunpack.c.l.b16 %v125
    %v200 = vunpack.c.h.b16 %v125
    %v201 = vunpack.c.l.b16 %v126
    %v202 = vunpack.c.h.b16 %v126
    %v203 = vunpack.c.l.b16 %v127
    %v204 = vunpack.c.h.b16 %v127
    %v205 = vunpack.c.l.b16 %v128
    %v206 = vunpack.c.h.b16 %v128
    %v207 = vunpack.c.l.b16 %v129
    %v208 = vunpack.c.h.b16 %v129
    %v209 = vunpack.c.l.b16 %v130
    %v210 = vunpack.c.h.b16 %v130
    %v211 = vunpack.c.l.b16 %v131
    %v212 = vunpack.c.h.b16 %v131
    %v213 = vunpack.c.l.b16 %v132
    %v214 = vunpack.c.h.b16 %v132
    %v215 = vunpack.c.l.b16 %v133
    %v216 = vunpack.c.h.b16 %v133
    %v217 = vunpack.c.l.b16 %v134
    %v218 = vunpack.c.h.b16 %v134
    %v219 = vunpack.c.l.b16 %v135
    %v220 = vunpack.c.h.b16 %v135
    %v221 = vunpack.c.l.b16 %v136
    %v222 = vunpack.c.h.b16 %v136
    %v223 = vunpack.c.l.b16 %v137
    %v224 = vunpack.c.h.b16 %v137
    %v225 = vunpack.c.l.b16 %v138
    %v226 = vunpack.c.h.b16 %v138
    %v227 = vunpack.c.l.b16 %v139
    %v228 = vunpack.c.h.b16 %v139
    %v229 = vunpack.c.l.b16 %v140
    %v230 = vunpack.c.h.b16 %v140
    %v231 = vunpack.c.l.b16 %v141
    %v232 = vunpack.c.h.b16 %v141
    %v233 = vunpack.c.l.b16 %v142
    %v234 = vunpack.c.h.b16 %v142
    %v235 = vunpack.c.l.b16 %v143
    %v236 = vunpack.c.h.b16 %v143
    %v237 = vunpack.c.l.b16 %v144
    %v238 = vunpack.c.h.b16 %v144
    %v239 = vunpack.c.l.b16 %v145
    %v240 = vunpack.c.h.b16 %v145
    %v241 = vunpack.c.l.b16 %v146
    %v242 = vunpack.c.h.b16 %v146
    %v243 = vunpack.c.l.b16 %v147
    %v244 = vunpack.c.h.b16 %v147
    %v245 = vunpack.c.l.b16 %v148
    %v246 = vunpack.c.h.b16 %v148
    %v247 = vunpack.c.l.b16 %v149
    %v248 = vunpack.c.h.b16 %v149
    %v249 = vunpack.c.l.b16 %v150
    %v250 = vunpack.c.h.b16 %v150
    %v251 = vunpack.c.l.b16 %v151
    %v252 = vunpack.c.h.b16 %v151
    %v253 = vunpack.c.l.b16 %v152
    %v254 = vunpack.c.h.b16 %v152
    %v255 = vunpack.c.l.b16 %v153
    %v256 = vunpack.c.h.b16 %v153
    %v257 = vunpack.c.l.b16 %v154
    %v258 = vunpack.c.h.b16 %v154
    %v259 = vunpack.c.l.b16 %v155
    %v260 = vunpack.c.h.b16 %v155
    %v261 = vunpack.c.l.b16 %v156
    %v262 = vunpack.c.h.b16 %v156
    %v263 = vpack.c.b16 %v203, %v199
    %v264 = vpack.c.b16 %v204, %v200
    %v265 = vpack.c.b16 %v205, %v201
    %v266 = vpack.c.b16 %v206, %v202
    %v267 = vpack.c.b16 %v211, %v207
    %v268 = vpack.c.b16 %v212, %v208
    %v269 = vpack.c.b16 %v213, %v209
    %v270 = vpack.c.b16 %v214, %v210
    %v271 = vpack.c.b16 %v219, %v215
    %v272 = vpack.c.b16 %v220, %v216
    %v273 = vpack.c.b16 %v221, %v217
    %v274 = vpack.c.b16 %v222, %v218
    %v275 = vpack.c.b16 %v227, %v223
    %v276 = vpack.c.b16 %v228, %v224
    %v277 = vpack.c.b16 %v229, %v225
    %v278 = vpack.c.b16 %v230, %v226
    %v279 = vpack.c.b16 %v235, %v231
    %v280 = vpack.c.b16 %v236, %v232
    %v281 = vpack.c.b16 %v237, %v233
    %v282 = vpack.c.b16 %v238, %v234
    %v283 = vpack.c.b16 %v243, %v239
    %v284 = vpack.c.b16 %v244, %v240
    %v285 = vpack.c.b16 %v245, %v241
    %v286 = vpack.c.b16 %v246, %v242
    %v287 = vpack.c.b16 %v251, %v247
    %v288 = vpack.c.b16 %v252, %v248
    %v289 = vpack.c.b16 %v253, %v249
    %v290 = vpack.c.b16 %v254, %v250
    %v291 = vpack.c.b16 %v259, %v255
    %v292 = vpack.c.b16 %v260, %v256
    %v293 = vpack.c.b16 %v261, %v257
    %v294 = vpack.c.b16 %v262, %v258
    %327 = vmatpush.bf16.msra.mxu0 %v291
    %328 = vmatpush.bf16.msra.mxu0 %v287
    %329 = vmatpush.bf16.msra.mxu0 %v283
    %330 = vmatpush.bf16.msra.mxu0 %v279
    %331 = vmatpush.bf16.msra.mxu0 %v275
    %332 = vmatpush.bf16.msra.mxu0 %v271
    %333 = vmatpush.bf16.msra.mxu0 %v267
    %334 = vmatpush.bf16.msra.mxu0 %v263
    %335 = vmatmul.bf16.gmra.mxu0 %v124
    %v336 = vpop.f32.mrf.mxu0
    %v337 = vadd.f32 %v159, %v336
    %v338 = vpop.f32.mrf.mxu0
    %339 = vdwg.mxu0
    %340 = vmatpush.bf16.msra.mxu0 %v292
    %341 = vmatpush.bf16.msra.mxu0 %v288
    %342 = vmatpush.bf16.msra.mxu0 %v284
    %343 = vmatpush.bf16.msra.mxu0 %v280
    %344 = vmatpush.bf16.msra.mxu0 %v276
    %345 = vmatpush.bf16.msra.mxu0 %v272
    %346 = vmatpush.bf16.msra.mxu0 %v268
    %347 = vmatpush.bf16.msra.mxu0 %v264
    %348 = vmatmul.bf16.gmra.mxu0 %v124
    %v349 = vpop.f32.mrf.mxu0
    %v350 = vadd.f32 %v160, %v349
    %v351 = vpop.f32.mrf.mxu0
    %352 = vdwg.mxu0
    %353 = vmatpush.bf16.msra.mxu0 %v293
    %354 = vmatpush.bf16.msra.mxu0 %v289
    %355 = vmatpush.bf16.msra.mxu0 %v285
    %356 = vmatpush.bf16.msra.mxu0 %v281
    %357 = vmatpush.bf16.msra.mxu0 %v277
    %358 = vmatpush.bf16.msra.mxu0 %v273
    %359 = vmatpush.bf16.msra.mxu0 %v269
    %360 = vmatpush.bf16.msra.mxu0 %v265
    %361 = vmatmul.bf16.gmra.mxu0 %v124
    %v362 = vpop.f32.mrf.mxu0
    %v363 = vadd.f32 %v161, %v362
    %v364 = vpop.f32.mrf.mxu0
    %365 = vdwg.mxu0
    %366 = vmatpush.bf16.msra.mxu0 %v294
    %367 = vmatpush.bf16.msra.mxu0 %v290
    %368 = vmatpush.bf16.msra.mxu0 %v286
    %369 = vmatpush.bf16.msra.mxu0 %v282
    %370 = vmatpush.bf16.msra.mxu0 %v278
    %371 = vmatpush.bf16.msra.mxu0 %v274
    %372 = vmatpush.bf16.msra.mxu0 %v270
    %373 = vmatpush.bf16.msra.mxu0 %v266
    %374 = vmatmul.bf16.gmra.mxu0 %v124
    %v375 = vpop.f32.mrf.mxu0
    %v376 = vadd.f32 %v162, %v375
    %v377 = vpop.f32.mrf.mxu0
    %378 = vdwg.mxu0
    %v379 = vxor.u32 %v337, 2147483648
    %v380 = vxor.u32 %v350, 2147483648
    %v381 = vxor.u32 %v363, 2147483648
    %v382 = vxor.u32 %v376, 2147483648
    %v383 = vmul.f32 %v379, 1.442695
    %v384 = vpow.pop %v383
    %v385 = vmul.f32 %v380, 1.442695
    %v386 = vpow.pop %v385
    %v387 = vmul.f32 %v381, 1.442695
    %v388 = vpow.pop %v387
    %v389 = vmul.f32 %v382, 1.442695
    %v390 = vpow.pop %v389
    %v391 = vadd.f32 %v384, 1.0
    %v392 = vadd.f32 %v386, 1.0
    %v393 = vadd.f32 %v388, 1.0
    %v394 = vadd.f32 %v390, 1.0
    %v395 = vrcp.pop %v391
    %v396 = vmul.f32 %v391, %v395
    %v397 = vsub.f32 1.0, %v396
    %v398 = vmul.f32 %v395, %v397
    %v399 = vadd.f32 %v395, %v398
    %vm400 = vweird.f32 %v391
    %vm401 = vweird.f32 %v395
    %vm402 = vmor %vm400, %vm401
    %v403 = vsel %vm402, %v395, %v399
    %v404 = vand.u32 2147483647, %v391
    %vm405 = vcmp.eq.f32.partialorder %v404, 8.507059e+37
    %v406 = vand.u32 %v391, 2147483648
    %v407 = vor.u32 1.1754944e-38, %v406
    %v408 = vsel %vm405, %v407, %v403
    %v409 = vmul.f32 1.0, %v408
    %v410 = vrcp.pop %v392
    %v411 = vmul.f32 %v392, %v410
    %v412 = vsub.f32 1.0, %v411
    %v413 = vmul.f32 %v410, %v412
    %v414 = vadd.f32 %v410, %v413
    %vm415 = vweird.f32 %v392
    %vm416 = vweird.f32 %v410
    %vm417 = vmor %vm415, %vm416
    %v418 = vsel %vm417, %v410, %v414
    %v419 = vand.u32 2147483647, %v392
    %vm420 = vcmp.eq.f32.partialorder %v419, 8.507059e+37
    %v421 = vand.u32 %v392, 2147483648
    %v422 = vor.u32 1.1754944e-38, %v421
    %v423 = vsel %vm420, %v422, %v418
    %v424 = vmul.f32 1.0, %v423
    %v425 = vrcp.pop %v393
    %v426 = vmul.f32 %v393, %v425
    %v427 = vsub.f32 1.0, %v426
    %v428 = vmul.f32 %v425, %v427
    %v429 = vadd.f32 %v425, %v428
    %vm430 = vweird.f32 %v393
    %vm431 = vweird.f32 %v425
    %vm432 = vmor %vm430, %vm431
    %v433 = vsel %vm432, %v425, %v429
    %v434 = vand.u32 2147483647, %v393
    %vm435 = vcmp.eq.f32.partialorder %v434, 8.507059e+37
    %v436 = vand.u32 %v393, 2147483648
    %v437 = vor.u32 1.1754944e-38, %v436
    %v438 = vsel %vm435, %v437, %v433
    %v439 = vmul.f32 1.0, %v438
    %v440 = vrcp.pop %v394
    %v441 = vmul.f32 %v394, %v440
    %v442 = vsub.f32 1.0, %v441
    %v443 = vmul.f32 %v440, %v442
    %v444 = vadd.f32 %v440, %v443
    %vm445 = vweird.f32 %v394
    %vm446 = vweird.f32 %v440
    %vm447 = vmor %vm445, %vm446
    %v448 = vsel %vm447, %v440, %v444
    %v449 = vand.u32 2147483647, %v394
    %vm450 = vcmp.eq.f32.partialorder %v449, 8.507059e+37
    %v451 = vand.u32 %v394, 2147483648
    %v452 = vor.u32 1.1754944e-38, %v451
    %v453 = vsel %vm450, %v452, %v448
    %v454 = vmul.f32 1.0, %v453
    %v455 = vmul.f32 %v337, %v409
    %v456 = vmul.f32 %v350, %v424
    %v457 = vmul.f32 %v363, %v439
    %v458 = vmul.f32 %v376, %v454
    %v459 = vpack.c.bf16 %v455, %v455
    %v460 = vpack.c.bf16 %v456, %v456
    %v461 = vpack.c.bf16 %v457, %v457
    %v462 = vpack.c.bf16 %v458, %v458
    %v463 = vld [vmem:[#allocation11] sm:$0xf]
    %v464 = vld [vmem:[#allocation11 + $0x4] sm:$0xf]
    %v465 = vld [vmem:[#allocation11 + $0x8] sm:$0xf]
    %v466 = vld [vmem:[#allocation11 + $0xc] sm:$0xf]
    %v467 = vld [vmem:[#allocation11 + $0x10] sm:$0xf]
    %v468 = vld [vmem:[#allocation11 + $0x14] sm:$0xf]
    %v469 = vld [vmem:[#allocation11 + $0x18] sm:$0xf]
    %v470 = vld [vmem:[#allocation11 + $0x1c] sm:$0xf]
    %v471 = vld [vmem:[#allocation11 + $0x20] sm:$0xf]
    %v472 = vld [vmem:[#allocation11 + $0x24] sm:$0xf]
    %v473 = vld [vmem:[#allocation11 + $0x28] sm:$0xf]
    %v474 = vld [vmem:[#allocation11 + $0x2c] sm:$0xf]
    %v475 = vld [vmem:[#allocation11 + $0x30] sm:$0xf]
    %v476 = vld [vmem:[#allocation11 + $0x34] sm:$0xf]
    %v477 = vld [vmem:[#allocation11 + $0x38] sm:$0xf]
    %v478 = vld [vmem:[#allocation11 + $0x3c] sm:$0xf]
    %v479 = vld [vmem:[#allocation11 + $0x40] sm:$0xf]
    %v480 = vld [vmem:[#allocation11 + $0x44] sm:$0xf]
    %v481 = vld [vmem:[#allocation11 + $0x48] sm:$0xf]
    %v482 = vld [vmem:[#allocation11 + $0x4c] sm:$0xf]
    %v483 = vld [vmem:[#allocation11 + $0x50] sm:$0xf]
    %v484 = vld [vmem:[#allocation11 + $0x54] sm:$0xf]
    %v485 = vld [vmem:[#allocation11 + $0x58] sm:$0xf]
    %v486 = vld [vmem:[#allocation11 + $0x5c] sm:$0xf]
    %v487 = vld [vmem:[#allocation11 + $0x60] sm:$0xf]
    %v488 = vld [vmem:[#allocation11 + $0x64] sm:$0xf]
    %v489 = vld [vmem:[#allocation11 + $0x68] sm:$0xf]
    %v490 = vld [vmem:[#allocation11 + $0x6c] sm:$0xf]
    %v491 = vld [vmem:[#allocation11 + $0x70] sm:$0xf]
    %v492 = vld [vmem:[#allocation11 + $0x74] sm:$0xf]
    %v493 = vld [vmem:[#allocation11 + $0x78] sm:$0xf]
    %v494 = vld [vmem:[#allocation11 + $0x7c] sm:$0xf]
    %v495 = vld [vmem:[#allocation11 + $0x80] sm:$0xf]
    %v496 = vld [vmem:[#allocation11 + $0x84] sm:$0xf]
    %v497 = vld [vmem:[#allocation11 + $0x88] sm:$0xf]
    %v498 = vld [vmem:[#allocation11 + $0x8c] sm:$0xf]
    %v499 = vld [vmem:[#allocation11 + $0x90] sm:$0xf]
    %v500 = vld [vmem:[#allocation11 + $0x94] sm:$0xf]
    %v501 = vld [vmem:[#allocation11 + $0x98] sm:$0xf]
    %v502 = vld [vmem:[#allocation11 + $0x9c] sm:$0xf]
    %v503 = vld [vmem:[#allocation11 + $0xa0] sm:$0xf]
    %v504 = vld [vmem:[#allocation11 + $0xa4] sm:$0xf]
    %v505 = vld [vmem:[#allocation11 + $0xa8] sm:$0xf]
    %v506 = vld [vmem:[#allocation11 + $0xac] sm:$0xf]
    %v507 = vld [vmem:[#allocation11 + $0xb0] sm:$0xf]
    %v508 = vld [vmem:[#allocation11 + $0xb4] sm:$0xf]
    %v509 = vld [vmem:[#allocation11 + $0xb8] sm:$0xf]
    %v510 = vld [vmem:[#allocation11 + $0xbc] sm:$0xf]
    %v511 = vld [vmem:[#allocation11 + $0xc0] sm:$0xf]
    %v512 = vld [vmem:[#allocation11 + $0xc4] sm:$0xf]
    %v513 = vld [vmem:[#allocation11 + $0xc8] sm:$0xf]
    %v514 = vld [vmem:[#allocation11 + $0xcc] sm:$0xf]
    %v515 = vld [vmem:[#allocation11 + $0xd0] sm:$0xf]
    %v516 = vld [vmem:[#allocation11 + $0xd4] sm:$0xf]
    %v517 = vld [vmem:[#allocation11 + $0xd8] sm:$0xf]
    %v518 = vld [vmem:[#allocation11 + $0xdc] sm:$0xf]
    %v519 = vld [vmem:[#allocation11 + $0xe0] sm:$0xf]
    %v520 = vld [vmem:[#allocation11 + $0xe4] sm:$0xf]
    %v521 = vld [vmem:[#allocation11 + $0xe8] sm:$0xf]
    %v522 = vld [vmem:[#allocation11 + $0xec] sm:$0xf]
    %v523 = vld [vmem:[#allocation11 + $0xf0] sm:$0xf]
    %v524 = vld [vmem:[#allocation11 + $0xf4] sm:$0xf]
    %v525 = vld [vmem:[#allocation11 + $0xf8] sm:$0xf]
    %v526 = vld [vmem:[#allocation11 + $0xfc] sm:$0xf]
    %v527 = vld [vmem:[%s5] sm:$0x1]
    %v529 = vperm.slane %v527, 0
    %v595 = vunpack.c.l.b16 %v463
    %v596 = vunpack.c.l.b16 %v464
    %v597 = vunpack.c.l.b16 %v465
    %v598 = vunpack.c.l.b16 %v466
    %v599 = vunpack.c.l.b16 %v467
    %v600 = vunpack.c.l.b16 %v468
    %v601 = vunpack.c.l.b16 %v469
    %v602 = vunpack.c.l.b16 %v470
    %v603 = vunpack.c.l.b16 %v471
    %v604 = vunpack.c.l.b16 %v472
    %v605 = vunpack.c.l.b16 %v473
    %v606 = vunpack.c.l.b16 %v474
    %v607 = vunpack.c.l.b16 %v475
    %v608 = vunpack.c.l.b16 %v476
    %v609 = vunpack.c.l.b16 %v477
    %v610 = vunpack.c.l.b16 %v478
    %v611 = vunpack.c.l.b16 %v479
    %v612 = vunpack.c.l.b16 %v480
    %v613 = vunpack.c.l.b16 %v481
    %v614 = vunpack.c.l.b16 %v482
    %v615 = vunpack.c.l.b16 %v483
    %v616 = vunpack.c.l.b16 %v484
    %v617 = vunpack.c.l.b16 %v485
    %v618 = vunpack.c.l.b16 %v486
    %v619 = vunpack.c.l.b16 %v487
    %v620 = vunpack.c.l.b16 %v488
    %v621 = vunpack.c.l.b16 %v489
    %v622 = vunpack.c.l.b16 %v490
    %v623 = vunpack.c.l.b16 %v491
    %v624 = vunpack.c.l.b16 %v492
    %v625 = vunpack.c.l.b16 %v493
    %v626 = vunpack.c.l.b16 %v494
    %v627 = vunpack.c.l.b16 %v495
    %v628 = vunpack.c.l.b16 %v496
    %v629 = vunpack.c.l.b16 %v497
    %v630 = vunpack.c.l.b16 %v498
    %v631 = vunpack.c.l.b16 %v499
    %v632 = vunpack.c.l.b16 %v500
    %v633 = vunpack.c.l.b16 %v501
    %v634 = vunpack.c.l.b16 %v502
    %v635 = vunpack.c.l.b16 %v503
    %v636 = vunpack.c.l.b16 %v504
    %v637 = vunpack.c.l.b16 %v505
    %v638 = vunpack.c.l.b16 %v506
    %v639 = vunpack.c.l.b16 %v507
    %v640 = vunpack.c.l.b16 %v508
    %v641 = vunpack.c.l.b16 %v509
    %v642 = vunpack.c.l.b16 %v510
    %v643 = vunpack.c.l.b16 %v511
    %v644 = vunpack.c.l.b16 %v512
    %v645 = vunpack.c.l.b16 %v513
    %v646 = vunpack.c.l.b16 %v514
    %v647 = vunpack.c.l.b16 %v515
    %v648 = vunpack.c.l.b16 %v516
    %v649 = vunpack.c.l.b16 %v517
    %v650 = vunpack.c.l.b16 %v518
    %v651 = vunpack.c.l.b16 %v519
    %v652 = vunpack.c.l.b16 %v520
    %v653 = vunpack.c.l.b16 %v521
    %v654 = vunpack.c.l.b16 %v522
    %v655 = vunpack.c.l.b16 %v523
    %v656 = vunpack.c.l.b16 %v524
    %v657 = vunpack.c.l.b16 %v525
    %v658 = vunpack.c.l.b16 %v526
    %v659 = vpack.c.b16 %v596, %v595
    %v660 = vpack.c.b16 %v598, %v597
    %v661 = vpack.c.b16 %v600, %v599
    %v662 = vpack.c.b16 %v602, %v601
    %v663 = vpack.c.b16 %v604, %v603
    %v664 = vpack.c.b16 %v606, %v605
    %v665 = vpack.c.b16 %v608, %v607
    %v666 = vpack.c.b16 %v610, %v609
    %v667 = vpack.c.b16 %v612, %v611
    %v668 = vpack.c.b16 %v614, %v613
    %v669 = vpack.c.b16 %v616, %v615
    %v670 = vpack.c.b16 %v618, %v617
    %v671 = vpack.c.b16 %v620, %v619
    %v672 = vpack.c.b16 %v622, %v621
    %v673 = vpack.c.b16 %v624, %v623
    %v674 = vpack.c.b16 %v626, %v625
    %v675 = vpack.c.b16 %v628, %v627
    %v676 = vpack.c.b16 %v630, %v629
    %v677 = vpack.c.b16 %v632, %v631
    %v678 = vpack.c.b16 %v634, %v633
    %v679 = vpack.c.b16 %v636, %v635
    %v680 = vpack.c.b16 %v638, %v637
    %v681 = vpack.c.b16 %v640, %v639
    %v682 = vpack.c.b16 %v642, %v641
    %v683 = vpack.c.b16 %v644, %v643
    %v684 = vpack.c.b16 %v646, %v645
    %v685 = vpack.c.b16 %v648, %v647
    %v686 = vpack.c.b16 %v650, %v649
    %v687 = vpack.c.b16 %v652, %v651
    %v688 = vpack.c.b16 %v654, %v653
    %v689 = vpack.c.b16 %v656, %v655
    %v690 = vpack.c.b16 %v658, %v657
    %723 = vmatpush.bf16.msra.mxu0 %v666
    %724 = vmatpush.bf16.msra.mxu0 %v665
    %725 = vmatpush.bf16.msra.mxu0 %v664
    %726 = vmatpush.bf16.msra.mxu0 %v663
    %727 = vmatpush.bf16.msra.mxu0 %v662
    %728 = vmatpush.bf16.msra.mxu0 %v661
    %729 = vmatpush.bf16.msra.mxu0 %v660
    %730 = vmatpush.bf16.msra.mxu0 %v659
    %731 = vmatmul.bf16.gmra.mxu0 %v459
    %v732 = vpop.f32.mrf.mxu0
    %v733 = vadd.f32 %v529, %v732
    %v734 = vpop.f32.mrf.mxu0
    %735 = vdwg.mxu0
    %736 = vmatpush.bf16.msra.mxu0 %v674
    %737 = vmatpush.bf16.msra.mxu0 %v673
    %738 = vmatpush.bf16.msra.mxu0 %v672
    %739 = vmatpush.bf16.msra.mxu0 %v671
    %740 = vmatpush.bf16.msra.mxu0 %v670
    %741 = vmatpush.bf16.msra.mxu0 %v669
    %742 = vmatpush.bf16.msra.mxu0 %v668
    %743 = vmatpush.bf16.msra.mxu0 %v667
    %744 = vmatmul.bf16.gmra.mxu0 %v460
    %v745 = vpop.f32.mrf.mxu0
    %v746 = vadd.f32 %v733, %v745
    %v747 = vpop.f32.mrf.mxu0
    %748 = vdwg.mxu0
    %749 = vmatpush.bf16.msra.mxu0 %v682
    %750 = vmatpush.bf16.msra.mxu0 %v681
    %751 = vmatpush.bf16.msra.mxu0 %v680
    %752 = vmatpush.bf16.msra.mxu0 %v679
    %753 = vmatpush.bf16.msra.mxu0 %v678
    %754 = vmatpush.bf16.msra.mxu0 %v677
    %755 = vmatpush.bf16.msra.mxu0 %v676
    %756 = vmatpush.bf16.msra.mxu0 %v675
    %757 = vmatmul.bf16.gmra.mxu0 %v461
    %v758 = vpop.f32.mrf.mxu0
    %v759 = vadd.f32 %v746, %v758
    %v760 = vpop.f32.mrf.mxu0
    %761 = vdwg.mxu0
    %762 = vmatpush.bf16.msra.mxu0 %v690
    %763 = vmatpush.bf16.msra.mxu0 %v689
    %764 = vmatpush.bf16.msra.mxu0 %v688
    %765 = vmatpush.bf16.msra.mxu0 %v687
    %766 = vmatpush.bf16.msra.mxu0 %v686
    %767 = vmatpush.bf16.msra.mxu0 %v685
    %768 = vmatpush.bf16.msra.mxu0 %v684
    %769 = vmatpush.bf16.msra.mxu0 %v683
    %770 = vmatmul.bf16.gmra.mxu0 %v462
    %v771 = vpop.f32.mrf.mxu0
    %v772 = vadd.f32 %v759, %v771
    %v773 = vpop.f32.mrf.mxu0
    %774 = vdwg.mxu0
    %775 = vst [vmem:[#allocation13] sm:$0xff] %v772
    // Predicated region
    $region38: #{tpu_custom_call.1} parent=1 // pred_check
      _
    $region39: #{tpu_custom_call.1} parent=1 // pred_check_branch
      %777 = sbr.rel (0) target = $region41
    $region40: #{tpu_custom_call.1} parent=1 // pred_region
      %779 = vsyncadd [#allocation7], 0
      %s781 = sshll.u32 [#allocation13], 4
      %s782 = int_to_ptr.vmem [resolvable:$true] %s781
      %s783 = sshll.u32 %s6, 4
      %s784 = int_to_ptr.hbm [resolvable:$true] %s783
      %786 = dma.vmem_to_hbm [thread:$0]  %s782, 128, %s784, [#allocation7]
    $region41: #{tpu_custom_call.1} parent=1 // pred_fallthru
      _
    // Predicated region
    $region42: #{tpu_custom_call.1} parent=1 // pred_check
      _
    $region43: #{tpu_custom_call.1} parent=1 // pred_check_branch
      %788 = sbr.rel (0) target = $region45
    $region44: #{tpu_custom_call.1} parent=1 // pred_region
      %790 = dma.done [#allocation7], 128
    $region45: #{tpu_custom_call.1} parent=1 // pred_fallthru
      _
    %791 = vsyncpa [#allocation6], 1
    %792 = vsyncpa [#allocation9], 1
    %793 = vsyncpa [#allocation12], 1
    %794 = vsyncpa [#allocation7], 1

</llo_original>
